<compile_context>
chip_gen: v7x
topology: tpu7x:2x2x1
jax: 0.10.0
libtpu: 0.0.40
codegen_flags: <defaults>
</compile_context>

<pallas_src>
import jax
import jax.numpy as jnp
from jax.experimental import pallas as pl
from jax.experimental.pallas import tpu as pltpu

SIGMA_DATA = 0.5
ALPHA = 1.2
LANE = 128
SUBLANE = 8

# Default feature-tile rows per grid step.  Worst-case working set (generator):
#   4 inputs x 2 pipeline buffers x TILE_R x 128 lanes x 4 B = 8 MiB @ TILE_R=2048
# which fits the scoped-VMEM default on every generation (v5e 16 MiB,
# v6e 32 MiB, v7x 32 MiB scoped / 64 MiB physical).  On v6e you may raise this
# to 4096 for slightly fewer grid steps; do NOT copy that to v7x blindly.
DEFAULT_TILE_R = 2048


# ----------------------------------------------------------------------------
# Kernels
# ----------------------------------------------------------------------------
def _student_kernel_nanfilter(t_ref, s_ref, g_ref, out_ref, acc_ref):
    """Per-batch partial: sum_n (student - xg)^2 with torch-style NaN removal."""
    j = pl.program_id(1)

    @pl.when(j == 0)
    def _():
        acc_ref[...] = jnp.zeros_like(acc_ref)

    t = t_ref[...].astype(jnp.float32)   # (TILE_R, 128)
    s = s_ref[...].astype(jnp.float32)
    g = g_ref[...].astype(jnp.float32)
    # torch removes NaN elements (boolean indexing) before summing; for a sum
    # this is equivalent to zeroing those elements' contributions.
    nan_mask = jnp.isnan(t) | jnp.isnan(s) | jnp.isnan(g)
    d = jnp.where(nan_mask, 0.0, s - g)
    acc_ref[...] += jnp.sum((d * d).reshape(-1, SUBLANE, LANE), axis=0)

    @pl.when(j == pl.num_programs(1) - 1)
    def _():
        out_ref[...] = jnp.zeros_like(out_ref) + jnp.sum(acc_ref[...])


def _student_kernel_fast(s_ref, g_ref, out_ref, acc_ref):
    """NaN filtering disabled: teacher_score is not streamed at all (it is only
    needed to build the NaN mask) -> ~1/3 less HBM traffic on this branch."""
    j = pl.program_id(1)

    @pl.when(j == 0)
    def _():
        acc_ref[...] = jnp.zeros_like(acc_ref)

    d = s_ref[...].astype(jnp.float32) - g_ref[...].astype(jnp.float32)
    acc_ref[...] += jnp.sum((d * d).reshape(-1, SUBLANE, LANE), axis=0)

    @pl.when(j == pl.num_programs(1) - 1)
    def _():
        out_ref[...] = jnp.zeros_like(out_ref) + jnp.sum(acc_ref[...])


def _generator_kernel(t_ref, s_ref, g_ref, x_ref, num_ref, abs_ref,
                      nacc_ref, aacc_ref):
    """Per-batch partials:
       num    = sum_n (t - s) * (t - xg - alpha*(t - s))
       abssum = sum_n |xt - t|   (used to build the per-batch weight in glue)"""
    j = pl.program_id(1)

    @pl.when(j == 0)
    def _():
        nacc_ref[...] = jnp.zeros_like(nacc_ref)
        aacc_ref[...] = jnp.zeros_like(aacc_ref)

    t = t_ref[...].astype(jnp.float32)
    s = s_ref[...].astype(jnp.float32)
    g = g_ref[...].astype(jnp.float32)
    x = x_ref[...].astype(jnp.float32)

    diff = t - s
    num = diff * (t - g - ALPHA * diff)
    nacc_ref[...] += jnp.sum(num.reshape(-1, SUBLANE, LANE), axis=0)
    aacc_ref[...] += jnp.sum(jnp.abs(x - t).reshape(-1, SUBLANE, LANE), axis=0)
    # TODO(synk): torch's NaN-removal path for the generator branch collapses
    # the filtered tensors to 1-D and would not broadcast against 4-D `xt`;
    # we implement the (well-defined) no-NaN semantics here.

    @pl.when(j == pl.num_programs(1) - 1)
    def _():
        num_ref[...] = jnp.zeros_like(num_ref) + jnp.sum(nacc_ref[...])
        abs_ref[...] = jnp.zeros_like(abs_ref) + jnp.sum(aacc_ref[...])


# ----------------------------------------------------------------------------
# Wrappers
# ----------------------------------------------------------------------------
def _pick_tile_r(r, target):
    """Largest feature tile (multiple of 8 sublanes) not exceeding `target`."""
    r8 = ((r + SUBLANE - 1) // SUBLANE) * SUBLANE
    return min(target, r8)


def _flatten_pad(x, tile_r):
    """(B, ...) -> (B, R_pad, 128), zero-padded so R_pad % tile_r == 0.
    Zero padding contributes zero to every sum in both branches, so no
    in-kernel tail masking is needed."""
    b = x.shape[0]
    n = x.size // b
    r = pl.cdiv(n, LANE)
    r_pad = pl.cdiv(r, tile_r) * tile_r
    n_pad = r_pad * LANE
    flat = x.reshape(b, n)
    if n_pad != n:
        flat = jnp.pad(flat, ((0, 0), (0, n_pad - n)))
    return flat.reshape(b, r_pad, LANE)


def _sid_loss_student(teacher_score, student_score, xg, sigma_t, *,
                      tile_r, filter_nans):
    B = student_score.shape[0]
    n = student_score.size // B
    tr = _pick_tile_r(pl.cdiv(n, LANE), tile_r)

    s = _flatten_pad(student_score, tr)
    g = _flatten_pad(xg, tr)
    if filter_nans:
        args = [_flatten_pad(teacher_score, tr), s, g]
        kernel = _student_kernel_nanfilter
    else:
        args = [s, g]
        kernel = _student_kernel_fast

    r_pad = s.shape[1]
    tile_spec = pl.BlockSpec((None, tr, LANE), lambda b, j: (b, j, 0))

    partial = pl.pallas_call(
        kernel,
        out_shape=jax.ShapeDtypeStruct((B, 1, 1), jnp.float32),
        grid_spec=pltpu.PrefetchScalarGridSpec(
            num_scalar_prefetch=0,
            grid=(B, r_pad // tr),
            in_specs=[tile_spec] * len(args),
            out_specs=pl.BlockSpec((1, 1, 1), lambda b, j: (b, 0, 0)),
            scratch_shapes=[pltpu.VMEM((SUBLANE, LANE), jnp.float32)],
        ),
        compiler_params=pltpu.CompilerParams(
            dimension_semantics=("parallel", "arbitrary")),
    )(*args)

    # glue: per-batch sigma weight applied outside the kernel (drops the SMEM
    # sigma input and the per-tile scalar multiply; enables batch-parallel).
    sigma = sigma_t.reshape(B).astype(jnp.float32)
    w = (sigma * sigma + SIGMA_DATA * SIGMA_DATA) / ((sigma * SIGMA_DATA) ** 2)
    return jnp.sum(w * partial.reshape(B))


def _sid_loss_generator(teacher_score, student_score, xg, xt, *, tile_r):
    B = teacher_score.shape[0]
    n_per_sample = teacher_score.size // B
    tr = _pick_tile_r(pl.cdiv(n_per_sample, LANE), tile_r)

    t = _flatten_pad(teacher_score, tr)
    s = _flatten_pad(student_score, tr)
    g = _flatten_pad(xg, tr)
    x = _flatten_pad(xt, tr)
    r_pad = t.shape[1]

    tile_spec = pl.BlockSpec((None, tr, LANE), lambda b, j: (b, j, 0))
    acc_spec = pl.BlockSpec((1, 1, 1), lambda b, j: (b, 0, 0))

    num_sum, abs_sum = pl.pallas_call(
        _generator_kernel,
        out_shape=(jax.ShapeDtypeStruct((B, 1, 1), jnp.float32),
                   jax.ShapeDtypeStruct((B, 1, 1), jnp.float32)),
        grid_spec=pltpu.PrefetchScalarGridSpec(
            num_scalar_prefetch=0,
            grid=(B, r_pad // tr),
            in_specs=[tile_spec] * 4,
            out_specs=(acc_spec, acc_spec),
            scratch_shapes=[pltpu.VMEM((SUBLANE, LANE), jnp.float32)] * 2,
        ),
        compiler_params=pltpu.CompilerParams(
            dimension_semantics=("parallel", "arbitrary")),
    )(t, s, g, x)

    # glue: per-batch mean |xt - teacher|, clip, divide, sum over batch.
    weight = jnp.maximum(abs_sum.reshape(B) / n_per_sample, 1e-5)
    return jnp.sum(num_sum.reshape(B) / weight)


def sid_loss(teacher_score, student_score, xg, xt, sigma_t, loss_type="student",
             *, tile_r=DEFAULT_TILE_R, filter_nans=True):
    if loss_type == "student":
        return _sid_loss_student(teacher_score, student_score, xg, sigma_t,
                                 tile_r=tile_r, filter_nans=filter_nans)
    return _sid_loss_generator(teacher_score, student_score, xg, xt,
                               tile_r=tile_r)


# ----------------------------------------------------------------------------
# Demo / self-check
# ----------------------------------------------------------------------------
def _check(shape, tile_r):
    B = shape[0]
    ks = jax.random.split(jax.random.PRNGKey(0), 5)
    teacher = jax.random.normal(ks[0], shape, jnp.float32)
    student = jax.random.normal(ks[1], shape, jnp.float32)
    xg = jax.random.normal(ks[2], shape, jnp.float32)
    xt = jax.random.normal(ks[3], shape, jnp.float32)
    sigma_t = jax.random.uniform(ks[4], (B, 1, 1, 1), jnp.float32, 0.1, 2.0)

    s_loss = jax.block_until_ready(
        sid_loss(teacher, student, xg, xt, sigma_t, loss_type="student",
                 tile_r=tile_r))
    g_loss = jax.block_until_ready(
        sid_loss(teacher, student, xg, xt, sigma_t, loss_type="generator",
                 tile_r=tile_r))
    s_fast = jax.block_until_ready(
        sid_loss(teacher, student, xg, xt, sigma_t, loss_type="student",
                 tile_r=tile_r, filter_nans=False))

    # plain-JAX reference (mirrors the torch forward semantics, no NaNs present)
    w_ref = (sigma_t ** 2 + SIGMA_DATA ** 2) / (sigma_t * SIGMA_DATA) ** 2
    s_ref = jnp.sum(w_ref * (student - xg) ** 2)
    gw = jnp.maximum(
        jnp.mean(jnp.abs(xt - teacher), axis=(1, 2, 3), keepdims=True), 1e-5)
    g_ref = jnp.sum(
        (teacher - student) * (teacher - xg - ALPHA * (teacher - student)) / gw)

    assert jnp.allclose(s_loss, s_ref, rtol=1e-3, atol=1e-2), (shape, s_loss, s_ref)
    assert jnp.allclose(s_fast, s_ref, rtol=1e-3, atol=1e-2), (shape, s_fast, s_ref)
    assert jnp.allclose(g_loss, g_ref, rtol=1e-3, atol=1e-2), (shape, g_loss, g_ref)


if __name__ == "__main__":
    # small canonical shape (C*H*W = 1024 -> single feature tile per batch)
    _check((2, 4, 16, 16), DEFAULT_TILE_R)
    # ragged C*H*W (4*17*17 = 1156 -> zero-padded tail) with a tiny tile to
    # exercise multi-tile accumulation across the "arbitrary" grid axis.
    _check((2, 4, 17, 17), 8)
    print("KERNEL_OK")
</pallas_src>

<mosaic_0001>
module attributes {stable_mosaic.version = 11 : i64} {
  func.func @_student_kernel_nanfilter(%arg0: i32, %arg1: i32, %arg2: memref<1x8x128xf32, #tpu.memory_space<vmem>>, %arg3: memref<1x8x128xf32, #tpu.memory_space<vmem>>, %arg4: memref<1x8x128xf32, #tpu.memory_space<vmem>>, %arg5: memref<1x1x1xf32, #tpu.memory_space<vmem>>, %arg6: memref<8x128xf32, #tpu.memory_space<vmem>>) attributes {dimension_semantics = [#tpu.dimension_semantics<parallel>, #tpu.dimension_semantics<arbitrary>], iteration_bounds = array<i64: 2, 1>, scalar_prefetch = 0 : i64, scratch_operands = 1 : i64, tpu.core_type = #tpu.core_type<tc>, window_params = [{transform_indices = @transform_0, window_bounds = array<i64: 1, 8, 128>}, {transform_indices = @transform_1, window_bounds = array<i64: 1, 8, 128>}, {transform_indices = @transform_2, window_bounds = array<i64: 1, 8, 128>}, {transform_indices = @transform_3, window_bounds = array<i64: 1, 1, 1>}]} {
    %c0_i32 = arith.constant 0 : i32
    %0 = arith.cmpi eq, %arg1, %c0_i32 : i32
    %1 = arith.extui %0 : i1 to i32
    %c0_i32_0 = arith.constant 0 : i32
    %2 = arith.cmpi ne, %1, %c0_i32_0 : i32
    scf.if %2 {
      %cst_16 = arith.constant 0.000000e+00 : f32
      %26 = vector.broadcast %cst_16 : f32 to vector<8x128xf32>
      %c0_17 = arith.constant 0 : index
      %c0_18 = arith.constant 0 : index
      %27 = vector.load %arg6[%c0_17, %c0_18] : memref<8x128xf32, #tpu.memory_space<vmem>>, vector<8x128xf32>
      tpu.vector_store %arg6[%c0_17, %c0_18], %26 {strides = array<i32>} : memref<8x128xf32, #tpu.memory_space<vmem>>, vector<8x128xf32>,
    } else {
    }
    %c0 = arith.constant 0 : index
    %c0_1 = arith.constant 0 : index
    %c0_2 = arith.constant 0 : index
    %3 = vector.load %arg2[%c0, %c0_1, %c0_2] : memref<1x8x128xf32, #tpu.memory_space<vmem>>, vector<1x8x128xf32>
    %4 = vector.shape_cast %3 : vector<1x8x128xf32> to vector<8x128xf32>
    %c0_3 = arith.constant 0 : index
    %c0_4 = arith.constant 0 : index
    %c0_5 = arith.constant 0 : index
    %5 = vector.load %arg3[%c0_3, %c0_4, %c0_5] : memref<1x8x128xf32, #tpu.memory_space<vmem>>, vector<1x8x128xf32>
    %6 = vector.shape_cast %5 : vector<1x8x128xf32> to vector<8x128xf32>
    %c0_6 = arith.constant 0 : index
    %c0_7 = arith.constant 0 : index
    %c0_8 = arith.constant 0 : index
    %7 = vector.load %arg4[%c0_6, %c0_7, %c0_8] : memref<1x8x128xf32, #tpu.memory_space<vmem>>, vector<1x8x128xf32>
    %8 = vector.shape_cast %7 : vector<1x8x128xf32> to vector<8x128xf32>
    %9 = arith.cmpf one, %4, %4 : vector<8x128xf32>
    %10 = arith.cmpf one, %6, %6 : vector<8x128xf32>
    %11 = arith.ori %9, %10 : vector<8x128xi1>
    %12 = arith.cmpf one, %8, %8 : vector<8x128xf32>
    %13 = arith.ori %11, %12 : vector<8x128xi1>
    %14 = arith.subf %6, %8 : vector<8x128xf32>
    %cst = arith.constant 0.000000e+00 : f32
    %15 = vector.broadcast %cst : f32 to vector<8x128xf32>
    %16 = arith.select %13, %15, %14 : vector<8x128xi1>, vector<8x128xf32>
    %c0_9 = arith.constant 0 : index
    %c0_10 = arith.constant 0 : index
    %17 = vector.load %arg6[%c0_9, %c0_10] : memref<8x128xf32, #tpu.memory_space<vmem>>, vector<8x128xf32>
    %18 = arith.mulf %16, %16 : vector<8x128xf32>
    %19 = vector.shape_cast %18 : vector<8x128xf32> to vector<1x8x128xf32>
    %cst_11 = arith.constant dense<0.000000e+00> : vector<8x128xf32>
    %20 = vector.multi_reduction <add>, %19, %cst_11 [0] : vector<1x8x128xf32> to vector<8x128xf32>
    %21 = arith.addf %17, %20 : vector<8x128xf32>
    %c0_12 = arith.constant 0 : index
    %c0_13 = arith.constant 0 : index
    %22 = vector.load %arg6[%c0_12, %c0_13] : memref<8x128xf32, #tpu.memory_space<vmem>>, vector<8x128xf32>
    tpu.vector_store %arg6[%c0_12, %c0_13], %21 {strides = array<i32>} : memref<8x128xf32, #tpu.memory_space<vmem>>, vector<8x128xf32>,
    %c0_i32_14 = arith.constant 0 : i32
    %23 = arith.cmpi eq, %arg1, %c0_i32_14 : i32
    %24 = arith.extui %23 : i1 to i32
    %c0_i32_15 = arith.constant 0 : i32
    %25 = arith.cmpi ne, %24, %c0_i32_15 : i32
    scf.if %25 {
      %cst_16 = arith.constant 0.000000e+00 : f32
      %26 = vector.broadcast %cst_16 : f32 to vector<1x1x1xf32>
      %c0_17 = arith.constant 0 : index
      %c0_18 = arith.constant 0 : index
      %27 = vector.load %arg6[%c0_17, %c0_18] : memref<8x128xf32, #tpu.memory_space<vmem>>, vector<8x128xf32>
      %28 = vector.shape_cast %27 : vector<8x128xf32> to vector<1x8x128xf32>
      %cst_19 = arith.constant dense<0.000000e+00> : vector<1xf32>
      %29 = vector.multi_reduction <add>, %28, %cst_19 [1, 2] : vector<1x8x128xf32> to vector<1xf32>
      %30 = vector.shape_cast %29 : vector<1xf32> to vector<1x1x1xf32>
      %31 = vector.extract %30[0, 0, 0] : f32 from vector<1x1x1xf32>
      %32 = vector.broadcast %31 : f32 to vector<1x1x1xf32>
      %33 = arith.addf %26, %32 : vector<1x1x1xf32>
      %c0_20 = arith.constant 0 : index
      %c0_21 = arith.constant 0 : index
      %c0_22 = arith.constant 0 : index
      %34 = vector.load %arg5[%c0_20, %c0_21, %c0_22] : memref<1x1x1xf32, #tpu.memory_space<vmem>>, vector<1x1x1xf32>
      tpu.vector_store %arg5[%c0_20, %c0_21, %c0_22], %33 {strides = array<i32>} : memref<1x1x1xf32, #tpu.memory_space<vmem>>, vector<1x1x1xf32>,
    } else {
    }
    return
  }
  func.func @transform_0(%arg0: i32, %arg1: i32) -> (i32, i32, i32) {
    %c0_i32 = arith.constant 0 : i32
    %c0_i32_0 = arith.constant 0 : i32
    return %arg0, %arg1, %c0_i32 : i32, i32, i32
  }
  func.func @transform_1(%arg0: i32, %arg1: i32) -> (i32, i32, i32) {
    %c0_i32 = arith.constant 0 : i32
    %c0_i32_0 = arith.constant 0 : i32
    return %arg0, %arg1, %c0_i32 : i32, i32, i32
  }
  func.func @transform_2(%arg0: i32, %arg1: i32) -> (i32, i32, i32) {
    %c0_i32 = arith.constant 0 : i32
    %c0_i32_0 = arith.constant 0 : i32
    return %arg0, %arg1, %c0_i32 : i32, i32, i32
  }
  func.func @transform_3(%arg0: i32, %arg1: i32) -> (i32, i32, i32) {
    %c0_i32 = arith.constant 0 : i32
    %c0_i32_0 = arith.constant 0 : i32
    %c0_i32_1 = arith.constant 0 : i32
    return %arg0, %c0_i32, %c0_i32_0 : i32, i32, i32
  }
}

</mosaic_0001>

<llo_original>
// kernel: tpu_custom_call.1
$region0: #{tpu_custom_call.1}
  #allocation0 [shape = 'u32[]', space=smem, size = 0x4, offset = 0x4, fixed_abs, tag = 'smem constant byte address 0x4 - core index']
  #allocation1 [shape = 'u32[144,128]{1,0:T(1,128)}', space=vmem, size = 0x12000, scoped, tag = 'internal scratch']
  #allocation2 [shape = 'f32[8,128]{1,0:T(8,128)}', space=vmem, size = 0x1000, scoped, tag = 'scratch operand']
  %s0 = inlined_call_operand.hbm [shape: f32[2,8,128], index: 0, kind: input, shape index: {}]
  %s1 = inlined_call_operand.hbm [shape: f32[2,8,128], index: 1, kind: input, shape index: {}]
  %s2 = inlined_call_operand.hbm [shape: f32[2,8,128], index: 2, kind: input, shape index: {}]
  %s3 = inlined_call_operand.vmem [shape: f32[2,1,1], index: 3, kind: output, shape index: {}]
  %s4 = sld [smem:[#allocation0]]
  $region65: #{tpu_custom_call.1} parent=0
    _
  %s6 = ssub.s32 1, %s4
  %s7 = scalar_select 0, %s6, %s4
  $region1: #{tpu_custom_call.1} parent=0
    #allocation3 [shape = 'u8[8192]{0}', space=vmem, size = 0x2000, scoped, tag = 'input window, operand 0']
    #allocation4 [shape = 's32[2]{0}', space=sflag, size = 0x8, scoped, tag = 'scoped memory for tpu_custom_call.1']
    #allocation5 [shape = 'u8[8192]{0}', space=vmem, size = 0x2000, scoped, tag = 'input window, operand 1']
    #allocation6 [shape = 's32[2]{0}', space=sflag, size = 0x8, scoped, tag = 'scoped memory for tpu_custom_call.1']
    #allocation7 [shape = 'u8[8192]{0}', space=vmem, size = 0x2000, scoped, tag = 'input window, operand 2']
    %8 = vsyncpa [#allocation4], 0
    %s9 = scalar_lea.sflag [#allocation4], 1
    %10 = vsyncpa %s9, 0
    %11 = vsyncpa [#allocation6], 0
    %s12 = scalar_lea.sflag [#allocation6], 1
    %13 = vsyncpa %s12, 0
    loop: start=0, step=1, limit=4
    $region2: #{tpu_custom_call.1} parent=1 // loop_pre_header
      _
    $region3: #{tpu_custom_call.1} parent=1 // loop_header
      %s15 = sphi 0, %s19
      %p16 = scmp.ge.s32.totalorder %s15, 4
      %s22 = sphi 0, %s34
      %s23 = sphi 0, %s30
      %s24 = sphi 0, %s22
      %s25 = sphi 0, %s23
      %s26 = sphi 0, %s24
      %s27 = sphi 0, %s25
      %s39 = sphi 0, %s41
      %s42 = sphi 0, %s39
      %s43 = sphi 0, %s42
      %s59 = sphi 0, %s43
      %s67 = sphi 0, %s69
      %s70 = sphi 0, %s67
      %s71 = sphi 0, %s70
      %s87 = sphi 0, %s71
      %s95 = sphi 0, %s97
      %s98 = sphi 0, %s95
      %s99 = sphi 0, %s98
      %s115 = sphi 0, %s99
      %s121 = sphi 0, %s123
      %s124 = sphi 0, %s121
      %s125 = sphi 0, %s124
      %s141 = sphi 0, %s125
    $region4: #{tpu_custom_call.1} parent=1 // loop_header_branch
      %18 = sbr.rel (%p16) target = $region8
    $region5: #{tpu_custom_call.1} parent=1 // loop_body
      %s20 = ssub.s32 %s15, 1
      %s21 = ssub.s32 %s15, 2
      %s28 = sadd.s32 1, %s23
      %p29 = scmp.ge.s32.totalorder %s28, 1
      %s30 = scalar_select %p29, 0, %s28
      %s31 = sadd.s32 1, %s22
      %s32 = scalar_select %p29, %s31, %s22
      %p33 = scmp.ge.s32.totalorder %s32, 2
      %s34 = scalar_select %p33, 0, %s32
      %s35 = ssub.s32 %s22, %s34
      %s36 = ssub.s32 %s23, %s30
      %s37 = sor.u32 %s35, %s36
      %p38 = scmp.eq.s32.totalorder %s37, 0
      %s40 = sadd.s32 %s39, 1
      %s41 = scalar_select %p38, %s39, %s40
      %p44 = pneg %p38
      %p45 = scmp.eq.s32.totalorder %s15, 1
      %p46 = por %p44, %p45
      %p47 = scmp.ne.s32.totalorder %s39, %s42
      %p48 = scmp.eq.s32.totalorder %s15, 0
      %p49 = por %p47, %p48
      %p50 = scmp.ne.s32.totalorder %s39, %s42
      %p51 = scmp.eq.s32.totalorder %s20, 1
      %p52 = por %p50, %p51
      %p53 = scmp.ne.s32.totalorder %s42, %s43
      %p54 = scmp.eq.s32.totalorder %s20, 0
      %p55 = por %p53, %p54
      %p56 = scmp.ne.s32.totalorder %s42, %s43
      %p57 = scmp.eq.s32.totalorder %s21, 1
      %p58 = por %p56, %p57
      %p60 = scmp.ne.s32.totalorder %s43, %s59
      %p61 = scmp.eq.s32.totalorder %s21, 0
      %p62 = por %p60, %p61
      %s63 = ssub.s32 %s22, %s34
      %s64 = ssub.s32 %s23, %s30
      %s65 = sor.u32 %s63, %s64
      %p66 = scmp.eq.s32.totalorder %s65, 0
      %s68 = sadd.s32 %s67, 1
      %s69 = scalar_select %p66, %s67, %s68
      %p72 = pneg %p66
      %p73 = scmp.eq.s32.totalorder %s15, 1
      %p74 = por %p72, %p73
      %p75 = scmp.ne.s32.totalorder %s67, %s70
      %p76 = scmp.eq.s32.totalorder %s15, 0
      %p77 = por %p75, %p76
      %p78 = scmp.ne.s32.totalorder %s67, %s70
      %p79 = scmp.eq.s32.totalorder %s20, 1
      %p80 = por %p78, %p79
      %p81 = scmp.ne.s32.totalorder %s70, %s71
      %p82 = scmp.eq.s32.totalorder %s20, 0
      %p83 = por %p81, %p82
      %p84 = scmp.ne.s32.totalorder %s70, %s71
      %p85 = scmp.eq.s32.totalorder %s21, 1
      %p86 = por %p84, %p85
      %p88 = scmp.ne.s32.totalorder %s71, %s87
      %p89 = scmp.eq.s32.totalorder %s21, 0
      %p90 = por %p88, %p89
      %s91 = ssub.s32 %s22, %s34
      %s92 = ssub.s32 %s23, %s30
      %s93 = sor.u32 %s91, %s92
      %p94 = scmp.eq.s32.totalorder %s93, 0
      %s96 = sadd.s32 %s95, 1
      %s97 = scalar_select %p94, %s95, %s96
      %p100 = pneg %p94
      %p101 = scmp.eq.s32.totalorder %s15, 1
      %p102 = por %p100, %p101
      %p103 = scmp.ne.s32.totalorder %s95, %s98
      %p104 = scmp.eq.s32.totalorder %s15, 0
      %p105 = por %p103, %p104
      %p106 = scmp.ne.s32.totalorder %s95, %s98
      %p107 = scmp.eq.s32.totalorder %s20, 1
      %p108 = por %p106, %p107
      %p109 = scmp.ne.s32.totalorder %s98, %s99
      %p110 = scmp.eq.s32.totalorder %s20, 0
      %p111 = por %p109, %p110
      %p112 = scmp.ne.s32.totalorder %s98, %s99
      %p113 = scmp.eq.s32.totalorder %s21, 1
      %p114 = por %p112, %p113
      %p116 = scmp.ne.s32.totalorder %s99, %s115
      %p117 = scmp.eq.s32.totalorder %s21, 0
      %p118 = por %p116, %p117
      %s119 = ssub.s32 %s22, %s34
      %p120 = scmp.eq.s32.totalorder %s119, 0
      %s122 = sadd.s32 %s121, 1
      %s123 = scalar_select %p120, %s121, %s122
      %p126 = pneg %p120
      %p127 = scmp.eq.s32.totalorder %s15, 1
      %p128 = por %p126, %p127
      %p129 = scmp.ne.s32.totalorder %s121, %s124
      %p130 = scmp.eq.s32.totalorder %s15, 0
      %p131 = por %p129, %p130
      %p132 = scmp.ne.s32.totalorder %s121, %s124
      %p133 = scmp.eq.s32.totalorder %s20, 1
      %p134 = por %p132, %p133
      %p135 = scmp.ne.s32.totalorder %s124, %s125
      %p136 = scmp.eq.s32.totalorder %s20, 0
      %p137 = por %p135, %p136
      %p138 = scmp.ne.s32.totalorder %s124, %s125
      %p139 = scmp.eq.s32.totalorder %s21, 1
      %p140 = por %p138, %p139
      %p142 = scmp.ne.s32.totalorder %s125, %s141
      %p143 = scmp.eq.s32.totalorder %s21, 0
      %p144 = por %p142, %p143
      %p145 = scmp.le.s32.totalorder 1, %s15
      %p146 = scmp.lt.s32.totalorder %s15, 3
      %p147 = pnand %p145, %p146
      %p148 = pneg %p147
      // Predicated region
      $region9: #{tpu_custom_call.1} parent=5 // pred_check
        _
      $region10: #{tpu_custom_call.1} parent=5 // pred_check_branch
        %150 = sbr.rel (%p147) target = $region12
      $region11: #{tpu_custom_call.1} parent=5 // pred_region
        %s151 = ssub.s32 %s15, 1
      $region12: #{tpu_custom_call.1} parent=5 // pred_fallthru
        _
      %p152 = scmp.lt.s32.totalorder %s15, 2
      // Predicated region
      $region13: #{tpu_custom_call.1} parent=5 // pred_check
        %p153 = pneg %p152
      $region14: #{tpu_custom_call.1} parent=5 // pred_check_branch
        %155 = sbr.rel (%p153) target = $region16
      $region15: #{tpu_custom_call.1} parent=5 // pred_region
        // Predicated region
        $region17: #{tpu_custom_call.1} parent=15 // pred_check
          %p156 = pneg %p49
        $region18: #{tpu_custom_call.1} parent=15 // pred_check_branch
          %158 = sbr.rel (%p156) target = $region20
        $region19: #{tpu_custom_call.1} parent=15 // pred_region
          %s159 = sand.u32 %s39, 1
          %s160 = scalar_lea.sflag [#allocation4], %s159
          %s161 = sand.u32 %s39, 1
          %s162 = smul.addr %s161, 8
          %s163 = scalar_lea.vmem [#allocation3], %s162
          %s165 = ssub.s32 128, 128
          %166 = vsyncadd %s160, %s165
          %s167 = sadd.s32 %s23, %s22
          %s168 = smul.addr %s167, 128
          %s169 = scalar_lea.hbm %s0, %s168
          %s171 = sshll.u32 %s163, 4
          %s172 = int_to_ptr.vmem [resolvable:$true] %s171
          %174 = dma.hbm_to_vmem [thread:$0]  %s169, 128, %s172, %s160
        $region20: #{tpu_custom_call.1} parent=15 // pred_fallthru
          _
        // Predicated region
        $region21: #{tpu_custom_call.1} parent=15 // pred_check
          %p175 = pneg %p77
        $region22: #{tpu_custom_call.1} parent=15 // pred_check_branch
          %177 = sbr.rel (%p175) target = $region24
        $region23: #{tpu_custom_call.1} parent=15 // pred_region
          %s178 = sand.u32 %s15, 1
          %s179 = scalar_lea.sflag [#allocation6], %s178
          %s180 = sand.u32 %s67, 1
          %s181 = smul.addr %s180, 8
          %s182 = scalar_lea.vmem [#allocation5], %s181
          %s184 = ssub.s32 128, 128
          %185 = vsyncadd %s179, %s184
          %s186 = sadd.s32 %s23, %s22
          %s187 = smul.addr %s186, 128
          %s188 = scalar_lea.hbm %s1, %s187
          %s190 = sshll.u32 %s182, 4
          %s191 = int_to_ptr.vmem [resolvable:$true] %s190
          %193 = dma.hbm_to_vmem [thread:$0]  %s188, 128, %s191, %s179
        $region24: #{tpu_custom_call.1} parent=15 // pred_fallthru
          _
        // Predicated region
        $region25: #{tpu_custom_call.1} parent=15 // pred_check
          %p194 = pneg %p105
        $region26: #{tpu_custom_call.1} parent=15 // pred_check_branch
          %196 = sbr.rel (%p194) target = $region28
        $region27: #{tpu_custom_call.1} parent=15 // pred_region
          %s197 = sand.u32 %s15, 1
          %s198 = scalar_lea.sflag [#allocation6], %s197
          %s199 = sand.u32 %s95, 1
          %s200 = smul.addr %s199, 8
          %s201 = scalar_lea.vmem [#allocation7], %s200
          %s203 = ssub.s32 128, 128
          %204 = vsyncadd %s198, %s203
          %s205 = sadd.s32 %s23, %s22
          %s206 = smul.addr %s205, 128
          %s207 = scalar_lea.hbm %s2, %s206
          %s209 = sshll.u32 %s201, 4
          %s210 = int_to_ptr.vmem [resolvable:$true] %s209
          %212 = dma.hbm_to_vmem [thread:$0]  %s207, 128, %s210, %s198
        $region28: #{tpu_custom_call.1} parent=15 // pred_fallthru
          _
      $region16: #{tpu_custom_call.1} parent=5 // pred_fallthru
        _
      %p213 = scmp.le.s32.totalorder 1, %s15
      %p214 = scmp.lt.s32.totalorder %s15, 3
      %p215 = pnand %p213, %p214
      %p216 = pneg %p215
      // Predicated region
      $region29: #{tpu_custom_call.1} parent=5 // pred_check
        _
      $region30: #{tpu_custom_call.1} parent=5 // pred_check_branch
        %218 = sbr.rel (%p215) target = $region32
      $region31: #{tpu_custom_call.1} parent=5 // pred_region
        %s219 = ssub.s32 %s15, 1
        %s220 = sand.u32 %s42, 1
        %s221 = scalar_lea.sflag [#allocation4], %s220
        %s222 = sand.u32 %s42, 1
        %s223 = smul.addr %s222, 8
        %s224 = scalar_lea.vmem [#allocation3], %s223
        // Predicated region
        $region33: #{tpu_custom_call.1} parent=31 // pred_check
          %p225 = pneg %p55
        $region34: #{tpu_custom_call.1} parent=31 // pred_check_branch
          %227 = sbr.rel (%p225) target = $region36
        $region35: #{tpu_custom_call.1} parent=31 // pred_region
          %228 = dma.done %s221, 128
        $region36: #{tpu_custom_call.1} parent=31 // pred_fallthru
          _
        %s229 = sand.u32 %s20, 1
        %s230 = scalar_lea.sflag [#allocation6], %s229
        %s231 = sand.u32 %s70, 1
        %s232 = smul.addr %s231, 8
        %s233 = scalar_lea.vmem [#allocation5], %s232
        // Predicated region
        $region37: #{tpu_custom_call.1} parent=31 // pred_check
          %p234 = pneg %p83
        $region38: #{tpu_custom_call.1} parent=31 // pred_check_branch
          %236 = sbr.rel (%p234) target = $region40
        $region39: #{tpu_custom_call.1} parent=31 // pred_region
          %237 = dma.done %s230, 128
        $region40: #{tpu_custom_call.1} parent=31 // pred_fallthru
          _
        %s238 = sand.u32 %s20, 1
        %s239 = scalar_lea.sflag [#allocation6], %s238
        %s240 = sand.u32 %s98, 1
        %s241 = smul.addr %s240, 8
        %s242 = scalar_lea.vmem [#allocation7], %s241
        // Predicated region
        $region41: #{tpu_custom_call.1} parent=31 // pred_check
          %p243 = pneg %p111
        $region42: #{tpu_custom_call.1} parent=31 // pred_check_branch
          %245 = sbr.rel (%p243) target = $region44
        $region43: #{tpu_custom_call.1} parent=31 // pred_region
          %246 = dma.done %s239, 128
        $region44: #{tpu_custom_call.1} parent=31 // pred_fallthru
          _
        %s247 = sand.u32 %s42, 1
        %s248 = scalar_lea.sflag [#allocation4], %s247
        %s249 = sand.u32 %s42, 1
        %s250 = smul.addr %s249, 8
        %s251 = scalar_lea.vmem [#allocation3], %s250
        %p252 = pneg %p55
        %p253 = pneg %p52
        %s254 = sand.u32 %s20, 1
        %s255 = scalar_lea.sflag [#allocation6], %s254
        %s256 = sand.u32 %s70, 1
        %s257 = smul.addr %s256, 8
        %s258 = scalar_lea.vmem [#allocation5], %s257
        %p259 = pneg %p83
        %p260 = pneg %p80
        %s261 = sand.u32 %s20, 1
        %s262 = scalar_lea.sflag [#allocation6], %s261
        %s263 = sand.u32 %s98, 1
        %s264 = smul.addr %s263, 8
        %s265 = scalar_lea.vmem [#allocation7], %s264
        %p266 = pneg %p111
        %p267 = pneg %p108
        %p268 = pneg %p137
        %p269 = pneg %p134
        %p270 = scmp.lt.s32.totalorder %s24, 1
        %s271 = scalar_select %p270, %s24, 1
        %s272 = scalar_lea.vmem %s3, %s271
        %p273 = scmp.lt.s32.totalorder %s24, 1
        %s274 = scalar_select %p273, %s24, 1
        %s275 = scalar_lea.vmem %s3, %s274
        %p276 = scmp.eq.s32.totalorder %s25, 0
        // Predicated region
        $region45: #{tpu_custom_call.1} parent=31 // pred_check
          %p277 = pneg %p276
        $region46: #{tpu_custom_call.1} parent=31 // pred_check_branch
          %279 = sbr.rel (%p277) target = $region48
        $region47: #{tpu_custom_call.1} parent=31 // pred_region
          %280 = vst [vmem:[#allocation2] sm:$0xff] 0.0
        $region48: #{tpu_custom_call.1} parent=31 // pred_fallthru
          _
        %v281 = vld [vmem:[%s224] sm:$0xff]
        %v282 = vld [vmem:[%s233] sm:$0xff]
        %v283 = vld [vmem:[%s242] sm:$0xff]
        %vm284 = vcmp.ne.f32.partialorder %v281, %v281
        %vm285 = vcmp.ne.f32.partialorder %v282, %v282
        %vm286 = vmor %vm284, %vm285
        %vm287 = vcmp.ne.f32.partialorder %v283, %v283
        %vm288 = vmor %vm286, %vm287
        %v289 = vsub.f32 %v282, %v283
        %v290 = vsel %vm288, 0.0, %v289
        %v291 = vld [vmem:[#allocation2] sm:$0xff]
        %v292 = vmul.f32 %v290, %v290
        %v293 = vadd.f32 %v292, 0.0
        %v294 = vadd.f32 %v291, %v293
        %295 = vst [vmem:[#allocation2] sm:$0xff] %v294
        // Predicated region
        $region49: #{tpu_custom_call.1} parent=31 // pred_check
          %p296 = pneg %p276
        $region50: #{tpu_custom_call.1} parent=31 // pred_check_branch
          %298 = sbr.rel (%p296) target = $region52
        $region51: #{tpu_custom_call.1} parent=31 // pred_region
          %v299 = vld [vmem:[#allocation2] sm:$0xff]
          %300 = vadd.xlane.f32.xlu0 %v299
          %v301 = vpop.xlane.xlu0 %300
          %v302 = vrot.slane %v301, 4
          %v303 = vadd.f32 %v301, %v302
          %v304 = vrot.slane %v303, 2
          %v305 = vadd.f32 %v303, %v304
          %v306 = vrot.slane %v305, 1
          %v307 = vadd.f32 %v305, %v306
          %s308 = vtos %v307
          %v309 = vstv %s308
          %v310 = vadd.f32 %v309, 0.0
          %vm311 = vcmask 0
          %312 = vst.msk [vmem:[%s275] sm:$0x1] %vm311, %v310
        $region52: #{tpu_custom_call.1} parent=31 // pred_fallthru
          _
        %p313 = scmp.lt.s32.totalorder %s24, 1
        %s314 = scalar_select %p313, %s24, 1
        %s315 = scalar_lea.vmem %s3, %s314
        // Predicated region
        $region53: #{tpu_custom_call.1} parent=31 // pred_check
          %p316 = pneg %p134
        $region54: #{tpu_custom_call.1} parent=31 // pred_check_branch
          %318 = sbr.rel (%p316) target = $region56
        $region55: #{tpu_custom_call.1} parent=31 // pred_region
          _
        $region56: #{tpu_custom_call.1} parent=31 // pred_fallthru
          _
      $region32: #{tpu_custom_call.1} parent=5 // pred_fallthru
        _
      %p319 = scmp.le.s32.totalorder 2, %s15
      // Predicated region
      $region57: #{tpu_custom_call.1} parent=5 // pred_check
        %p320 = pneg %p319
      $region58: #{tpu_custom_call.1} parent=5 // pred_check_branch
        %322 = sbr.rel (%p320) target = $region60
      $region59: #{tpu_custom_call.1} parent=5 // pred_region
        %s323 = ssub.s32 %s15, 2
        // Predicated region
        $region61: #{tpu_custom_call.1} parent=59 // pred_check
          %p324 = pneg %p140
        $region62: #{tpu_custom_call.1} parent=59 // pred_check_branch
          %326 = sbr.rel (%p324) target = $region64
        $region63: #{tpu_custom_call.1} parent=59 // pred_region
          %p327 = scmp.lt.s32.totalorder %s26, 1
          %s328 = scalar_select %p327, %s26, 1
          %s329 = scalar_lea.vmem %s3, %s328
        $region64: #{tpu_custom_call.1} parent=59 // pred_fallthru
          _
      $region60: #{tpu_custom_call.1} parent=5 // pred_fallthru
        _
    $region6: #{tpu_custom_call.1} parent=1 // loop_footer
      %s19 = sadd.s32 1, %s15
    $region7: #{tpu_custom_call.1} parent=1 // loop_footer_branch
      %14 = sbr.rel target = $region3
    $region8: #{tpu_custom_call.1} parent=1 // loop_exit
      _
    %330 = vsyncpa [#allocation4], 1
    %s331 = scalar_lea.sflag [#allocation4], 1
    %332 = vsyncpa %s331, 1
    %333 = vsyncpa [#allocation6], 1
    %s334 = scalar_lea.sflag [#allocation6], 1
    %335 = vsyncpa %s334, 1

</llo_original>
